<compile_context>
chip_gen: v7x
topology: tpu7x:2x2x1
jax: 0.10.0
libtpu: 0.0.40
codegen_flags: <defaults>
</compile_context>

<pallas_src>
import functools

import numpy as np
import jax
import jax.numpy as jnp
from jax import lax
from jax.experimental import pallas as pl
from jax.experimental.pallas import tpu as pltpu


def _round_up(a, m):
    return ((a + m - 1) // m) * m


def _cdiv(a, b):
    return (a + b - 1) // b


def _blur_kernel_body(x_ref, o_ref, *, taps2d, sep, tile_rows, kh):
    """x_ref: (tile_rows + kh - 1, Wpad) pre-summed rows for one H-tile (incl. halo).
    o_ref: (tile_rows, Wpad).  Blur taps are baked in as compile-time constants."""
    x = x_ref[...].astype(jnp.float32)
    wpad = x.shape[-1]

    def shift_left_lanes(arr, v):
        # result[:, w] == arr[:, w + v] for w < wpad - v.  Wrapped columns land
        # only at w >= Wo, which the wrapper crops away.
        if v == 0:
            return arr
        return pltpu.roll(arr, shift=wpad - v, axis=1)

    acc = None
    if sep is not None:
        a_col, b_row = sep
        # Horizontal pass: kw taps on the XLU lane-rotate path.
        h = None
        for v, bv in enumerate(b_row):
            if bv == 0.0:
                continue
            t = bv * shift_left_lanes(x, v)
            h = t if h is None else h + t
        if h is None:
            h = jnp.zeros_like(x)
        # Vertical pass: kh taps via cheap static sublane slices.
        for u, au in enumerate(a_col):
            if au == 0.0:
                continue
            t = au * h[u:u + tile_rows, :]
            acc = t if acc is None else acc + t
    else:
        for u in range(kh):
            row = None
            for v, kuv in enumerate(taps2d[u]):
                if kuv == 0.0:
                    continue
                t = kuv * shift_left_lanes(x, v)
                row = t if row is None else row + t
            if row is None:
                continue
            t = row[u:u + tile_rows, :]
            acc = t if acc is None else acc + t

    if acc is None:  # degenerate all-zero kernel
        acc = jnp.zeros((tile_rows, wpad), jnp.float32)
    o_ref[...] = acc.astype(o_ref.dtype)


def make_fixed_blur(kernel2d, *, tile_rows=256, vmem_budget_bytes=12 * 1024 * 1024):
    """Build a jitted forward(x) equivalent to FixedBlurLayer(kernel2d)(x).

    kernel2d is a fixed (kh, kw) array baked in as compile-time constants
    (matching the module's requires_grad=False mask).
    """
    k = np.asarray(kernel2d, dtype=np.float64)
    kh, kw = k.shape
    pad_w = (kh - 1) // 2   # module: to_pad_x from kernel.shape[0], applied to W
    pad_h = (kw - 1) // 2   # module: to_pad_y from kernel.shape[1], applied to H

    # Rank-1 (separable) detection at build time.
    sep = None
    i0, j0 = np.unravel_index(np.argmax(np.abs(k)), k.shape)
    if abs(k[i0, j0]) > 0:
        a_col = k[:, j0] / k[i0, j0]
        b_row = k[i0, :]
        if np.allclose(np.outer(a_col, b_row), k, rtol=1e-6, atol=1e-12):
            sep = (tuple(float(v) for v in a_col), tuple(float(v) for v in b_row))
    taps2d = tuple(tuple(float(k[u, v]) for v in range(kw)) for u in range(kh))

    def forward(x):
        n, c, h, w = x.shape
        assert c == 3, "FixedBlurLayer expects 3-channel NCHW input"
        orig_dtype = x.dtype

        # conv2d with a channel-replicated mask == 2D correlation of the channel
        # sum with the kernel.  Sum + reflection pad fuse in the XLA prologue.
        xs = jnp.sum(x.astype(jnp.float32), axis=1)                       # (N, H, W)
        xs = jnp.pad(xs, ((0, 0), (pad_h, pad_h), (pad_w, pad_w)),
                     mode="reflect")                                      # (N, Hp, Wp)
        hp, wp = h + 2 * pad_h, w + 2 * pad_w
        ho, wo = hp - kh + 1, wp - kw + 1

        # Lane-dense width (multiple of 128), sublane-aligned row tiles
        # (multiple of 8), sized so double-buffered in+out blocks fit the
        # scoped-VMEM budget (safe for v5e 16 MiB / v7x 32 MiB defaults).
        wpad = max(128, _round_up(wp, 128))
        bytes_per_row = 4 * wpad
        max_rows = max(8, (vmem_budget_bytes // (4 * bytes_per_row)) // 8 * 8)
        th_target = max(8, min(tile_rows, max_rows))
        nh = _cdiv(ho, th_target)
        th = _round_up(_cdiv(ho, nh), 8)
        nh = _cdiv(ho, th)
        rows = th + kh - 1                  # input rows per tile, incl. halo
        h_big = nh * th + kh - 1

        xs = jnp.pad(xs, ((0, 0), (0, h_big - hp), (0, wpad - wp)))
        # (N, nH, TH + kh - 1, Wpad): each H-tile with its kh-1 halo rows.
        slab = jnp.stack(
            [xs[:, i * th:i * th + rows, :] for i in range(nh)], axis=1)

        body = functools.partial(_blur_kernel_body, taps2d=taps2d, sep=sep,
                                 tile_rows=th, kh=kh)
        out = pl.pallas_call(
            body,
            out_shape=jax.ShapeDtypeStruct((n, nh, th, wpad), jnp.float32),
            grid=(n, nh),
            in_specs=[pl.BlockSpec((None, None, rows, wpad),
                                   lambda b, i: (b, i, 0, 0))],
            out_specs=pl.BlockSpec((None, None, th, wpad),
                                   lambda b, i: (b, i, 0, 0)),
            compiler_params=pltpu.CompilerParams(
                dimension_semantics=("parallel", "parallel")),
        )(slab)

        out = out.reshape(n, nh * th, wpad)[:, :ho, :wo]
        return out[:, None, :, :].astype(orig_dtype)

    return jax.jit(forward)


def _torch_reference(x, kernel2d):
    """Pure-JAX reference identical to F.conv2d(ReflectionPad2d(...)(x), mask)."""
    k = jnp.asarray(np.asarray(kernel2d), jnp.float32)
    kh, kw = k.shape
    pad_w = (kh - 1) // 2
    pad_h = (kw - 1) // 2
    xp = jnp.pad(x, ((0, 0), (0, 0), (pad_h, pad_h), (pad_w, pad_w)),
                 mode="reflect")
    wt = jnp.broadcast_to(k, (1, 3, kh, kw)).astype(jnp.float32)
    return lax.conv_general_dilated(
        xp, wt, window_strides=(1, 1), padding="VALID",
        dimension_numbers=("NCHW", "OIHW", "NCHW"))


if __name__ == "__main__":
    key = jax.random.PRNGKey(0)
    N, C, H, W = 2, 3, 16, 16
    x = jax.random.uniform(key, (N, C, H, W), dtype=jnp.float32)

    # 1) Separable (rank-1) fixed kernel: normalized 3x3 binomial blur.
    w1d = np.array([1.0, 2.0, 1.0], np.float64)
    kern_sep = np.outer(w1d, w1d)
    kern_sep = kern_sep / kern_sep.sum()
    blur_sep = make_fixed_blur(kern_sep)
    out_sep = jax.block_until_ready(blur_sep(x))
    assert out_sep.shape == (N, 1, H, W), out_sep.shape
    ref_sep = _torch_reference(x, kern_sep)
    assert jnp.allclose(out_sep, ref_sep, atol=1e-5, rtol=1e-5), \
        float(jnp.max(jnp.abs(out_sep - ref_sep)))

    # 2) Non-separable kernel exercises the general 2-D tap path.
    kern_gen = np.array([[0.0, 1.0, 0.0],
                         [1.0, 2.0, 1.0],
                         [0.0, 1.0, 0.0]], np.float64) / 6.0
    blur_gen = make_fixed_blur(kern_gen)
    out_gen = jax.block_until_ready(blur_gen(x))
    assert out_gen.shape == (N, 1, H, W), out_gen.shape
    ref_gen = _torch_reference(x, kern_gen)
    assert jnp.allclose(out_gen, ref_gen, atol=1e-5, rtol=1e-5), \
        float(jnp.max(jnp.abs(out_gen - ref_gen)))

    print("KERNEL_OK")
</pallas_src>

<mosaic_0001>
module attributes {stable_mosaic.version = 11 : i64} {
  func.func @_blur_kernel_body(%arg0: i32, %arg1: i32, %arg2: memref<1x1x18x128xf32, #tpu.memory_space<vmem>>, %arg3: memref<1x1x16x128xf32, #tpu.memory_space<vmem>>) attributes {dimension_semantics = [#tpu.dimension_semantics<parallel>, #tpu.dimension_semantics<parallel>], iteration_bounds = array<i64: 2, 1>, scalar_prefetch = 0 : i64, scratch_operands = 0 : i64, tpu.core_type = #tpu.core_type<tc>, window_params = [{transform_indices = @transform_0, window_bounds = array<i64: 1, 1, 18, 128>}, {transform_indices = @transform_1, window_bounds = array<i64: 1, 1, 16, 128>}]} {
    %c0 = arith.constant 0 : index
    %c0_0 = arith.constant 0 : index
    %c0_1 = arith.constant 0 : index
    %c0_2 = arith.constant 0 : index
    %0 = vector.load %arg2[%c0, %c0_0, %c0_1, %c0_2] : memref<1x1x18x128xf32, #tpu.memory_space<vmem>>, vector<1x1x18x128xf32>
    %1 = vector.shape_cast %0 : vector<1x1x18x128xf32> to vector<18x128xf32>
    %cst = arith.constant 1.250000e-01 : f32
    %2 = vector.broadcast %cst : f32 to vector<18x128xf32>
    %3 = arith.mulf %2, %1 : vector<18x128xf32>
    %c127_i32 = arith.constant 127 : i32
    %4 = tpu.dynamic_rotate %1 by %c127_i32 dim 1 : vector<18x128xf32>, i32 -> vector<18x128xf32>
    %cst_3 = arith.constant 2.500000e-01 : f32
    %5 = vector.broadcast %cst_3 : f32 to vector<18x128xf32>
    %6 = arith.mulf %5, %4 : vector<18x128xf32>
    %7 = arith.addf %3, %6 : vector<18x128xf32>
    %c126_i32 = arith.constant 126 : i32
    %8 = tpu.dynamic_rotate %1 by %c126_i32 dim 1 : vector<18x128xf32>, i32 -> vector<18x128xf32>
    %cst_4 = arith.constant 1.250000e-01 : f32
    %9 = vector.broadcast %cst_4 : f32 to vector<18x128xf32>
    %10 = arith.mulf %9, %8 : vector<18x128xf32>
    %11 = arith.addf %7, %10 : vector<18x128xf32>
    %12 = vector.extract_strided_slice %11 {offsets = [0, 0], sizes = [16, 128], strides = [1, 1]} : vector<18x128xf32> to vector<16x128xf32>
    %cst_5 = arith.constant 5.000000e-01 : f32
    %13 = vector.broadcast %cst_5 : f32 to vector<16x128xf32>
    %14 = arith.mulf %13, %12 : vector<16x128xf32>
    %15 = vector.extract_strided_slice %11 {offsets = [1, 0], sizes = [16, 128], strides = [1, 1]} : vector<18x128xf32> to vector<16x128xf32>
    %cst_6 = arith.constant 1.000000e+00 : f32
    %16 = vector.broadcast %cst_6 : f32 to vector<16x128xf32>
    %17 = arith.mulf %16, %15 : vector<16x128xf32>
    %18 = arith.addf %14, %17 : vector<16x128xf32>
    %19 = vector.extract_strided_slice %11 {offsets = [2, 0], sizes = [16, 128], strides = [1, 1]} : vector<18x128xf32> to vector<16x128xf32>
    %cst_7 = arith.constant 5.000000e-01 : f32
    %20 = vector.broadcast %cst_7 : f32 to vector<16x128xf32>
    %21 = arith.mulf %20, %19 : vector<16x128xf32>
    %22 = arith.addf %18, %21 : vector<16x128xf32>
    %c0_8 = arith.constant 0 : index
    %c0_9 = arith.constant 0 : index
    %c0_10 = arith.constant 0 : index
    %c0_11 = arith.constant 0 : index
    %23 = vector.load %arg3[%c0_8, %c0_9, %c0_10, %c0_11] : memref<1x1x16x128xf32, #tpu.memory_space<vmem>>, vector<1x1x16x128xf32>
    %24 = vector.shape_cast %23 : vector<1x1x16x128xf32> to vector<16x128xf32>
    %25 = vector.shape_cast %22 : vector<16x128xf32> to vector<1x1x16x128xf32>
    tpu.vector_store %arg3[%c0_8, %c0_9, %c0_10, %c0_11], %25 {strides = array<i32>} : memref<1x1x16x128xf32, #tpu.memory_space<vmem>>, vector<1x1x16x128xf32>,
    return
  }
  func.func @transform_0(%arg0: i32, %arg1: i32) -> (i32, i32, i32, i32) {
    %c0_i32 = arith.constant 0 : i32
    %c0_i32_0 = arith.constant 0 : i32
    %c0_i32_1 = arith.constant 0 : i32
    return %arg0, %arg1, %c0_i32, %c0_i32_0 : i32, i32, i32, i32
  }
  func.func @transform_1(%arg0: i32, %arg1: i32) -> (i32, i32, i32, i32) {
    %c0_i32 = arith.constant 0 : i32
    %c0_i32_0 = arith.constant 0 : i32
    %c0_i32_1 = arith.constant 0 : i32
    return %arg0, %arg1, %c0_i32, %c0_i32_0 : i32, i32, i32, i32
  }
}

</mosaic_0001>

<llo_original>
// kernel: forward.1
$region0: #{forward.1}
  #allocation0 [shape = 'u32[]', space=smem, size = 0x4, offset = 0x4, fixed_abs, tag = 'smem constant byte address 0x4 - core index']
  #allocation1 [shape = 'u32[144,128]{1,0:T(1,128)}', space=vmem, size = 0x12000, scoped, tag = 'internal scratch']
  %s0 = inlined_call_operand.vmem [shape: f32[2,1,18,128], index: 0, kind: input, shape index: {}]
  %s1 = inlined_call_operand.vmem [shape: f32[2,1,16,128], index: 1, kind: output, shape index: {}]
  %s2 = sld [smem:[#allocation0]]
  $region37: #{forward.1} parent=0
    _
  %s4 = ssub.s32 1, %s2
  %s5 = scalar_select 0, %s4, %s2
  loop: start=0, step=1, limit=4
  $region2: #{forward.1} parent=0 // loop_pre_header
    _
  $region3: #{forward.1} parent=0 // loop_header
    %s7 = sphi 0, %s11
    %p8 = scmp.ge.s32.totalorder %s7, 4
    %s14 = sphi 0, %s26
    %s15 = sphi 0, %s22
    %s16 = sphi 0, %s14
    %s17 = sphi 0, %s15
    %s18 = sphi 0, %s16
    %s19 = sphi 0, %s17
    %s31 = sphi 0, %s33
    %s34 = sphi 0, %s31
    %s35 = sphi 0, %s34
    %s51 = sphi 0, %s35
    %s59 = sphi 0, %s61
    %s62 = sphi 0, %s59
    %s63 = sphi 0, %s62
    %s79 = sphi 0, %s63
  $region4: #{forward.1} parent=0 // loop_header_branch
    %10 = sbr.rel (%p8) target = $region8
  $region5: #{forward.1} parent=0 // loop_body
    %s12 = ssub.s32 %s7, 1
    %s13 = ssub.s32 %s7, 2
    %s20 = sadd.s32 1, %s15
    %p21 = scmp.ge.s32.totalorder %s20, 1
    %s22 = scalar_select %p21, 0, %s20
    %s23 = sadd.s32 1, %s14
    %s24 = scalar_select %p21, %s23, %s14
    %p25 = scmp.ge.s32.totalorder %s24, 2
    %s26 = scalar_select %p25, 0, %s24
    %s27 = ssub.s32 %s14, %s26
    %s28 = ssub.s32 %s15, %s22
    %s29 = sor.u32 %s27, %s28
    %p30 = scmp.eq.s32.totalorder %s29, 0
    %s32 = sadd.s32 %s31, 1
    %s33 = scalar_select %p30, %s31, %s32
    %p36 = pneg %p30
    %p37 = scmp.eq.s32.totalorder %s7, 1
    %p38 = por %p36, %p37
    %p39 = scmp.ne.s32.totalorder %s31, %s34
    %p40 = scmp.eq.s32.totalorder %s7, 0
    %p41 = por %p39, %p40
    %p42 = scmp.ne.s32.totalorder %s31, %s34
    %p43 = scmp.eq.s32.totalorder %s12, 1
    %p44 = por %p42, %p43
    %p45 = scmp.ne.s32.totalorder %s34, %s35
    %p46 = scmp.eq.s32.totalorder %s12, 0
    %p47 = por %p45, %p46
    %p48 = scmp.ne.s32.totalorder %s34, %s35
    %p49 = scmp.eq.s32.totalorder %s13, 1
    %p50 = por %p48, %p49
    %p52 = scmp.ne.s32.totalorder %s35, %s51
    %p53 = scmp.eq.s32.totalorder %s13, 0
    %p54 = por %p52, %p53
    %s55 = ssub.s32 %s14, %s26
    %s56 = ssub.s32 %s15, %s22
    %s57 = sor.u32 %s55, %s56
    %p58 = scmp.eq.s32.totalorder %s57, 0
    %s60 = sadd.s32 %s59, 1
    %s61 = scalar_select %p58, %s59, %s60
    %p64 = pneg %p58
    %p65 = scmp.eq.s32.totalorder %s7, 1
    %p66 = por %p64, %p65
    %p67 = scmp.ne.s32.totalorder %s59, %s62
    %p68 = scmp.eq.s32.totalorder %s7, 0
    %p69 = por %p67, %p68
    %p70 = scmp.ne.s32.totalorder %s59, %s62
    %p71 = scmp.eq.s32.totalorder %s12, 1
    %p72 = por %p70, %p71
    %p73 = scmp.ne.s32.totalorder %s62, %s63
    %p74 = scmp.eq.s32.totalorder %s12, 0
    %p75 = por %p73, %p74
    %p76 = scmp.ne.s32.totalorder %s62, %s63
    %p77 = scmp.eq.s32.totalorder %s13, 1
    %p78 = por %p76, %p77
    %p80 = scmp.ne.s32.totalorder %s63, %s79
    %p81 = scmp.eq.s32.totalorder %s13, 0
    %p82 = por %p80, %p81
    %p83 = scmp.le.s32.totalorder 1, %s7
    %p84 = scmp.lt.s32.totalorder %s7, 3
    %p85 = pnand %p83, %p84
    %p86 = pneg %p85
    // Predicated region
    $region9: #{forward.1} parent=5 // pred_check
      _
    $region10: #{forward.1} parent=5 // pred_check_branch
      %88 = sbr.rel (%p85) target = $region12
    $region11: #{forward.1} parent=5 // pred_region
      %s89 = ssub.s32 %s7, 1
    $region12: #{forward.1} parent=5 // pred_fallthru
      _
    %p90 = scmp.lt.s32.totalorder %s7, 2
    // Predicated region
    $region13: #{forward.1} parent=5 // pred_check
      %p91 = pneg %p90
    $region14: #{forward.1} parent=5 // pred_check_branch
      %93 = sbr.rel (%p91) target = $region16
    $region15: #{forward.1} parent=5 // pred_region
      // Predicated region
      $region17: #{forward.1} parent=15 // pred_check
        %p94 = pneg %p41
      $region18: #{forward.1} parent=15 // pred_check_branch
        %96 = sbr.rel (%p94) target = $region20
      $region19: #{forward.1} parent=15 // pred_region
        %p97 = scmp.lt.s32.totalorder %s14, 1
        %s98 = scalar_select %p97, %s14, 1
        %p99 = scmp.lt.s32.totalorder %s15, 0
        %s100 = scalar_select %p99, %s15, 0
        %s101 = smul.addr %s100, 3
        %s102 = smul.addr %s98, 3
        %s103 = sadd.s32 %s101, %s102
        %s104 = smul.addr %s103, 8
        %s105 = scalar_lea.vmem %s0, %s104
      $region20: #{forward.1} parent=15 // pred_fallthru
        _
    $region16: #{forward.1} parent=5 // pred_fallthru
      _
    %p106 = scmp.le.s32.totalorder 1, %s7
    %p107 = scmp.lt.s32.totalorder %s7, 3
    %p108 = pnand %p106, %p107
    %p109 = pneg %p108
    // Predicated region
    $region21: #{forward.1} parent=5 // pred_check
      _
    $region22: #{forward.1} parent=5 // pred_check_branch
      %111 = sbr.rel (%p108) target = $region24
    $region23: #{forward.1} parent=5 // pred_region
      %s112 = ssub.s32 %s7, 1
      %p113 = scmp.lt.s32.totalorder %s16, 1
      %s114 = scalar_select %p113, %s16, 1
      %p115 = scmp.lt.s32.totalorder %s17, 0
      %s116 = scalar_select %p115, %s17, 0
      %s117 = smul.addr %s116, 3
      %s118 = smul.addr %s114, 3
      %s119 = sadd.s32 %s117, %s118
      %s120 = smul.addr %s119, 8
      %s121 = scalar_lea.vmem %s0, %s120
      %p122 = pneg %p47
      %p123 = pneg %p44
      %p124 = pneg %p75
      %p125 = pneg %p72
      %p126 = scmp.lt.s32.totalorder %s16, 1
      %s127 = scalar_select %p126, %s16, 1
      %p128 = scmp.lt.s32.totalorder %s17, 0
      %s129 = scalar_select %p128, %s17, 0
      %s130 = smul.addr %s129, 2
      %s131 = smul.addr %s127, 2
      %s132 = sadd.s32 %s130, %s131
      %s133 = smul.addr %s132, 8
      %s134 = scalar_lea.vmem %s1, %s133
      %p135 = scmp.lt.s32.totalorder %s16, 1
      %s136 = scalar_select %p135, %s16, 1
      %p137 = scmp.lt.s32.totalorder %s17, 0
      %s138 = scalar_select %p137, %s17, 0
      %s139 = smul.addr %s138, 3
      %s140 = smul.addr %s136, 3
      %s141 = sadd.s32 %s139, %s140
      %s142 = smul.addr %s141, 8
      %s143 = scalar_lea.vmem %s0, %s142
      %p144 = scmp.lt.s32.totalorder %s16, 1
      %s145 = scalar_select %p144, %s16, 1
      %p146 = scmp.lt.s32.totalorder %s17, 0
      %s147 = scalar_select %p146, %s17, 0
      %s148 = smul.addr %s147, 2
      %s149 = smul.addr %s145, 2
      %s150 = sadd.s32 %s148, %s149
      %s151 = smul.addr %s150, 8
      %s152 = scalar_lea.vmem %s1, %s151
      %v153 = vld [vmem:[%s143] sm:$0xff]
      %v154 = vld [vmem:[%s143 + $0x8] sm:$0xff]
      %v155 = vld [vmem:[%s143 + $0x10] sm:$0x3]
      %v156 = vmul.f32 %v153, 0.125
      %v157 = vmul.f32 %v154, 0.125
      %v158 = vmul.f32 %v155, 0.125
      %159 = vrot.lane.b32.xlu0 %v153, 127
      %v160 = vpop.permute.xlu0 %159
      %161 = vrot.lane.b32.xlu0 %v154, 127
      %v162 = vpop.permute.xlu0 %161
      %163 = vrot.lane.b32.xlu0 %v155, 127
      %v164 = vpop.permute.xlu0 %163
      %v165 = vmul.f32 %v160, 0.25
      %v166 = vmul.f32 %v162, 0.25
      %v167 = vmul.f32 %v164, 0.25
      %v168 = vadd.f32 %v156, %v165
      %v169 = vadd.f32 %v157, %v166
      %v170 = vadd.f32 %v158, %v167
      %171 = vrot.lane.b32.xlu0 %v153, 126
      %v172 = vpop.permute.xlu0 %171
      %173 = vrot.lane.b32.xlu0 %v154, 126
      %v174 = vpop.permute.xlu0 %173
      %175 = vrot.lane.b32.xlu0 %v155, 126
      %v176 = vpop.permute.xlu0 %175
      %v177 = vmul.f32 %v172, 0.125
      %v178 = vmul.f32 %v174, 0.125
      %v179 = vmul.f32 %v176, 0.125
      %v180 = vadd.f32 %v168, %v177
      %v181 = vadd.f32 %v169, %v178
      %v182 = vadd.f32 %v170, %v179
      %v183 = vmul.f32 %v180, 0.5
      %v184 = vmul.f32 %v181, 0.5
      %vm188 = vcmask 1046528
      %v189 = vrot.slane %v180, 1
      %v190 = vrot.slane %v181, 1
      %v191 = vsel %vm188, %v189, %v190
      %v192 = vrot.slane %v182, 1
      %v193 = vsel %vm188, %v190, %v192
      %v196 = vadd.f32 %v183, %v191
      %v197 = vadd.f32 %v184, %v193
      %v198 = vmul.f32 %v182, 0.5
      %vm202 = vcmask 1045504
      %v203 = vrot.slane %v183, 2
      %v204 = vrot.slane %v184, 2
      %v205 = vsel %vm202, %v203, %v204
      %v206 = vrot.slane %v198, 2
      %v207 = vsel %vm202, %v204, %v206
      %v210 = vadd.f32 %v196, %v205
      %v211 = vadd.f32 %v197, %v207
      %212 = vst [vmem:[%s152] sm:$0xff] %v210
      %213 = vst [vmem:[%s152 + $0x8] sm:$0xff] %v211
      %p214 = scmp.lt.s32.totalorder %s16, 1
      %s215 = scalar_select %p214, %s16, 1
      %p216 = scmp.lt.s32.totalorder %s17, 0
      %s217 = scalar_select %p216, %s17, 0
      %s218 = smul.addr %s217, 2
      %s219 = smul.addr %s215, 2
      %s220 = sadd.s32 %s218, %s219
      %s221 = smul.addr %s220, 8
      %s222 = scalar_lea.vmem %s1, %s221
      // Predicated region
      $region25: #{forward.1} parent=23 // pred_check
        %p223 = pneg %p72
      $region26: #{forward.1} parent=23 // pred_check_branch
        %225 = sbr.rel (%p223) target = $region28
      $region27: #{forward.1} parent=23 // pred_region
        _
      $region28: #{forward.1} parent=23 // pred_fallthru
        _
    $region24: #{forward.1} parent=5 // pred_fallthru
      _
    %p226 = scmp.le.s32.totalorder 2, %s7
    // Predicated region
    $region29: #{forward.1} parent=5 // pred_check
      %p227 = pneg %p226
    $region30: #{forward.1} parent=5 // pred_check_branch
      %229 = sbr.rel (%p227) target = $region32
    $region31: #{forward.1} parent=5 // pred_region
      %s230 = ssub.s32 %s7, 2
      // Predicated region
      $region33: #{forward.1} parent=31 // pred_check
        %p231 = pneg %p78
      $region34: #{forward.1} parent=31 // pred_check_branch
        %233 = sbr.rel (%p231) target = $region36
      $region35: #{forward.1} parent=31 // pred_region
        %p234 = scmp.lt.s32.totalorder %s18, 1
        %s235 = scalar_select %p234, %s18, 1
        %p236 = scmp.lt.s32.totalorder %s19, 0
        %s237 = scalar_select %p236, %s19, 0
        %s238 = smul.addr %s237, 2
        %s239 = smul.addr %s235, 2
        %s240 = sadd.s32 %s238, %s239
        %s241 = smul.addr %s240, 8
        %s242 = scalar_lea.vmem %s1, %s241
      $region36: #{forward.1} parent=31 // pred_fallthru
        _
    $region32: #{forward.1} parent=5 // pred_fallthru
      _
  $region6: #{forward.1} parent=0 // loop_footer
    %s11 = sadd.s32 1, %s7
  $region7: #{forward.1} parent=0 // loop_footer_branch
    %6 = sbr.rel target = $region3
  $region8: #{forward.1} parent=0 // loop_exit
    _

</llo_original>
